<compile_context>
chip_gen: v6e
topology: v6e:2x2x1
jax: 0.10.0
libtpu: 0.0.40
codegen_flags: <defaults>
</compile_context>

<pallas_src>
import jax
import jax.numpy as jnp
from jax.experimental import pallas as pl
from jax.experimental.pallas import tpu as pltpu


def residual_linear_kernel(x_ref, w_ref, b_ref, o_ref):
    # x_ref: (tm, D) f32 token tile; w_ref: (D, D) bf16; b_ref: (1, D) f32
    x = x_ref[...]
    # bf16 x bf16 on the MXU, f32 accumulation.
    y = jnp.dot(x.astype(w_ref.dtype), w_ref[...],
                preferred_element_type=jnp.float32)
    # bias + residual in f32, then cast once on the way out.
    o_ref[...] = (y + b_ref[...] + x).astype(o_ref.dtype)


def _round_up(x, m):
    return (x + m - 1) // m * m


def _build_call(Mp, D, tm, out_dtype, w_dtype, *, single_buffer_weights,
                alias_input):
    const_kwargs = {}
    if single_buffer_weights:
        # Weight/bias are grid-invariant: the default second buffer is wasted VMEM.
        const_kwargs = dict(pipeline_mode=pl.Buffered(1))

    w_spec = pl.BlockSpec((D, D), lambda i: (0, 0), **const_kwargs)
    b_spec = pl.BlockSpec((1, D), lambda i: (0, 0), **const_kwargs)

    # VMEM budget: double-buffered x/out tiles (f32) + weight (bf16) + bias,
    # with ~1.5x headroom; capped at 48 MiB so it also fits v7x's 64 MiB VMEM.
    wbufs = 1 if single_buffer_weights else 2
    w_itemsize = jnp.dtype(w_dtype).itemsize
    est = (2 * tm * D * 4            # x tiles (double-buffered)
           + 2 * tm * D * 4          # out tiles (double-buffered)
           + wbufs * D * D * w_itemsize
           + wbufs * D * 4)          # bias
    vmem_limit = int(min(48 * 1024 * 1024, max(32 * 1024 * 1024, est * 3 // 2)))
    # TODO(synk): for very large D (bf16 weight > ~16 MiB) add a K-tiled
    # "arbitrary" grid axis with an f32 accumulator instead of a resident weight.

    cost = pl.CostEstimate(
        flops=2 * Mp * D * D,
        transcendentals=0,
        bytes_accessed=4 * Mp * D + 4 * Mp * D + w_itemsize * D * D + 4 * D,
    )

    # Only alias x -> out when x is a padded temporary owned by this op; each
    # output tile is written only after its x tile has been read, so reuse is
    # safe. Aliasing a live caller parameter would force XLA to copy it first.
    alias_kwargs = dict(input_output_aliases={0: 0}) if alias_input else {}

    return pl.pallas_call(
        residual_linear_kernel,
        out_shape=jax.ShapeDtypeStruct((Mp, D), out_dtype),
        grid_spec=pltpu.PrefetchScalarGridSpec(
            num_scalar_prefetch=0,
            grid=(Mp // tm,),
            in_specs=[
                pl.BlockSpec((tm, D), lambda i: (i, 0)),   # token tile
                w_spec,                                     # weight (resident)
                b_spec,                                     # bias (resident)
            ],
            out_specs=pl.BlockSpec((tm, D), lambda i: (i, 0)),
        ),
        compiler_params=pltpu.CompilerParams(
            dimension_semantics=("parallel",),
            vmem_limit_bytes=vmem_limit,
        ),
        cost_estimate=cost,
        **alias_kwargs,
    )


def residual_linear(x, w, b, *, tm=256):
    """fn(x) + x with fn = Linear(D, D).

    x: (B, N, D). w: (D_in, D_out) — i.e. torch nn.Linear.weight TRANSPOSED
    (torch stores (out, in)); passing a raw torch weight is silently wrong.
    b: (D,).
    """
    B, N, D = x.shape
    assert w.shape == (D, D), "w must be (D_in, D_out) (transposed torch weight)"
    assert b.shape == (D,), "b must be (D,)"
    # Lane-dense feature dim: D maps onto the 128-wide lane axis.
    assert D % 128 == 0, "feature dim must be a multiple of 128 (pad at model level)"

    M = B * N
    # Big row tile to keep the MXU busy, but keep the grid >= 2 steps so both
    # v7x TensorCores get work; tile stays a multiple of 8 (sublane).
    tm = max(8, min(tm, _round_up(pl.cdiv(M, 2), 8)))
    Mp = _round_up(M, tm)
    padded = Mp != M

    x2d = x.reshape(M, D)
    if padded:
        x2d = jnp.pad(x2d, ((0, Mp - M), (0, 0)))

    # bf16 operands for the MXU fast path; accumulation stays f32 in-kernel.
    w16 = w.astype(jnp.bfloat16)
    b2d = b.reshape(1, D).astype(jnp.float32)

    try:
        call = _build_call(Mp, D, tm, x.dtype, w16.dtype,
                           single_buffer_weights=True, alias_input=padded)
        out2d = call(x2d, w16, b2d)
    except Exception:
        # Fallback if pl.Buffered(1) single-buffering is rejected on this build.
        call = _build_call(Mp, D, tm, x.dtype, w16.dtype,
                           single_buffer_weights=False, alias_input=padded)
        out2d = call(x2d, w16, b2d)

    if padded:
        out2d = out2d[:M]
    return out2d.reshape(B, N, D)


if __name__ == "__main__":
    # Small but lane-dense ViT-ish shapes: 2 x 256 tokens, hidden dim 128
    # (D=128 keeps every vreg lane and MXU column busy; grid has 2 steps).
    B, N, D = 2, 256, 128
    key = jax.random.PRNGKey(0)
    kx, kw, kb = jax.random.split(key, 3)

    x = jax.random.normal(kx, (B, N, D), dtype=jnp.float32)
    # Deterministic Linear(D, D) params; w stored as (D_in, D_out)
    # (torch nn.Linear.weight transposed).
    w = (jax.random.uniform(kw, (D, D), dtype=jnp.float32) - 0.5) * (2.0 / jnp.sqrt(D))
    b = (jax.random.uniform(kb, (D,), dtype=jnp.float32) - 0.5) * (2.0 / jnp.sqrt(D))

    # jit the whole forward so the reshape / pad / casts fuse with the kernel
    # dispatch instead of running as separate eager ops.
    fwd = jax.jit(residual_linear)
    out = fwd(x, w, b)
    out = jax.block_until_ready(out)

    # Reference: fn(x) + x with the same bf16-operand / f32-accumulate matmul.
    ref = (
        jnp.dot(
            x.reshape(B * N, D).astype(jnp.bfloat16),
            w.astype(jnp.bfloat16),
            preferred_element_type=jnp.float32,
        ).reshape(B, N, D)
        + b
        + x
    )
    assert out.shape == (B, N, D)
    assert jnp.allclose(out, ref, atol=2e-3, rtol=2e-3), "mismatch vs reference"

    print("KERNEL_OK")
</pallas_src>

<mosaic_0001>
module attributes {stable_mosaic.version = 11 : i64} {
  func.func @residual_linear_kernel(%arg0: i32, %arg1: memref<256x128xf32, #tpu.memory_space<vmem>>, %arg2: memref<128x128xbf16, #tpu.memory_space<vmem>>, %arg3: memref<1x128xf32, #tpu.memory_space<vmem>>, %arg4: memref<256x128xf32, #tpu.memory_space<vmem>>) attributes {dimension_semantics = [#tpu.dimension_semantics<parallel>], iteration_bounds = array<i64: 2>, scalar_prefetch = 0 : i64, scratch_operands = 0 : i64, tpu.core_type = #tpu.core_type<tc>, window_params = [{transform_indices = @transform_0, window_bounds = array<i64: 256, 128>}, {pipeline_mode = #tpu.pipeline_mode<synchronous>, transform_indices = @transform_1, window_bounds = array<i64: 128, 128>}, {pipeline_mode = #tpu.pipeline_mode<synchronous>, transform_indices = @transform_2, window_bounds = array<i64: 1, 128>}, {transform_indices = @transform_3, window_bounds = array<i64: 256, 128>}]} {
    %c0 = arith.constant 0 : index
    %c0_0 = arith.constant 0 : index
    %0 = vector.load %arg1[%c0, %c0_0] : memref<256x128xf32, #tpu.memory_space<vmem>>, vector<256x128xf32>
    %1 = arith.truncf %0 : vector<256x128xf32> to vector<256x128xbf16>
    %c0_1 = arith.constant 0 : index
    %c0_2 = arith.constant 0 : index
    %2 = vector.load %arg2[%c0_1, %c0_2] : memref<128x128xbf16, #tpu.memory_space<vmem>>, vector<128x128xbf16>
    %cst = arith.constant dense<0.000000e+00> : vector<256x128xf32>
    %3 = tpu.matmul %1, %2, %cst {dimension_numbers = #tpu.dot_dimension_numbers<[1], [0], [0], [1], [0, 0, 1, 1], [], []>} : vector<256x128xbf16>, vector<128x128xbf16>, vector<256x128xf32> -> vector<256x128xf32>
    %c0_3 = arith.constant 0 : index
    %c0_4 = arith.constant 0 : index
    %4 = vector.load %arg3[%c0_3, %c0_4] : memref<1x128xf32, #tpu.memory_space<vmem>>, vector<1x128xf32>
    %5 = vector.broadcast %4 : vector<1x128xf32> to vector<256x128xf32>
    %6 = arith.addf %3, %5 : vector<256x128xf32>
    %7 = arith.addf %6, %0 : vector<256x128xf32>
    %c0_5 = arith.constant 0 : index
    %c0_6 = arith.constant 0 : index
    %8 = vector.load %arg4[%c0_5, %c0_6] : memref<256x128xf32, #tpu.memory_space<vmem>>, vector<256x128xf32>
    tpu.vector_store %arg4[%c0_5, %c0_6], %7 {strides = array<i32>} : memref<256x128xf32, #tpu.memory_space<vmem>>, vector<256x128xf32>,
    return
  }
  func.func @transform_0(%arg0: i32) -> (i32, i32) {
    %c0_i32 = arith.constant 0 : i32
    %c0_i32_0 = arith.constant 0 : i32
    return %arg0, %c0_i32 : i32, i32
  }
  func.func @transform_1(%arg0: i32) -> (i32, i32) {
    %c0_i32 = arith.constant 0 : i32
    %c0_i32_0 = arith.constant 0 : i32
    %c0_i32_1 = arith.constant 0 : i32
    return %c0_i32, %c0_i32_0 : i32, i32
  }
  func.func @transform_2(%arg0: i32) -> (i32, i32) {
    %c0_i32 = arith.constant 0 : i32
    %c0_i32_0 = arith.constant 0 : i32
    %c0_i32_1 = arith.constant 0 : i32
    return %c0_i32, %c0_i32_0 : i32, i32
  }
  func.func @transform_3(%arg0: i32) -> (i32, i32) {
    %c0_i32 = arith.constant 0 : i32
    %c0_i32_0 = arith.constant 0 : i32
    return %arg0, %c0_i32 : i32, i32
  }
}

</mosaic_0001>

<llo_original>
// kernel: residual_linear.1
$region0: #{residual_linear.1}
  #allocation0 [shape = 'u32[]', space=smem, size = 0x4, offset = 0x4, fixed_abs, tag = 'smem constant byte address 0x4 - core index']
  #allocation1 [shape = 'u32[144,128]{1,0:T(1,128)}', space=vmem, size = 0x12000, scoped, tag = 'internal scratch']
  %s0 = inlined_call_operand.hbm [shape: f32[512,128], index: 0, kind: input, shape index: {}]
  %s1 = inlined_call_operand.vmem [shape: bf16[128,128], index: 1, kind: input, shape index: {}]
  %s2 = inlined_call_operand.vmem [shape: f32[1,128], index: 2, kind: input, shape index: {}]
  %s3 = inlined_call_operand.hbm [shape: f32[512,128], index: 3, kind: output, shape index: {}]
  %s4 = sld [smem:[#allocation0]]
  $region49: #{residual_linear.1} parent=0
    _
  %s6 = ssub.s32 1, %s4
  %s7 = scalar_select 0, %s6, %s4
  $region1: #{residual_linear.1} parent=0
    #allocation2 [shape = 'u8[262144]{0}', space=vmem, size = 0x40000, scoped, tag = 'input window, operand 0']
    #allocation3 [shape = 's32[2]{0}', space=sflag, size = 0x8, scoped, tag = 'scoped memory for residual_linear.1']
    #allocation4 [shape = 's32[2]{0}', space=sflag, size = 0x8, scoped, tag = 'scoped memory for residual_linear.1']
    #allocation5 [shape = 'u8[262144]{0}', space=vmem, size = 0x40000, scoped, tag = 'output window, operand 0']
    %8 = vsyncpa [#allocation3], 0
    %s9 = scalar_lea.sflag [#allocation3], 1
    %10 = vsyncpa %s9, 0
    %11 = vsyncpa [#allocation4], 0
    %s12 = scalar_lea.sflag [#allocation4], 1
    %13 = vsyncpa %s12, 0
    loop: start=0, step=1, limit=4
    $region2: #{residual_linear.1} parent=1 // loop_pre_header
      _
    $region3: #{residual_linear.1} parent=1 // loop_header
      %s15 = sphi 0, %s19
      %p16 = scmp.ge.s32.totalorder %s15, 4
      %s25 = sphi 0, %s27
      %s28 = sphi 0, %s25
      %s29 = sphi 0, %s28
      %s45 = sphi 0, %s29
      %s49 = sphi 0, %s49
      %s51 = sphi 0, %s49
      %s52 = sphi 0, %s51
      %s66 = sphi 0, %s52
      %s70 = sphi 0, %s70
      %s72 = sphi 0, %s70
      %s73 = sphi 0, %s72
      %s87 = sphi 0, %s73
      %s93 = sphi 0, %s95
      %s96 = sphi 0, %s93
      %s97 = sphi 0, %s96
      %s113 = sphi 0, %s97
    $region4: #{residual_linear.1} parent=1 // loop_header_branch
      %18 = sbr.rel (%p16) target = $region8
    $region5: #{residual_linear.1} parent=1 // loop_body
      %s20 = ssub.s32 %s15, 1
      %s21 = ssub.s32 %s15, 2
      %s22 = sadd.s32 %s15, 1
      %s23 = ssub.s32 %s15, %s22
      %p24 = scmp.eq.s32.totalorder %s23, 0
      %s26 = sadd.s32 %s25, 1
      %s27 = scalar_select %p24, %s25, %s26
      %p30 = pneg %p24
      %p31 = scmp.eq.s32.totalorder %s15, 1
      %p32 = por %p30, %p31
      %p33 = scmp.ne.s32.totalorder %s25, %s28
      %p34 = scmp.eq.s32.totalorder %s15, 0
      %p35 = por %p33, %p34
      %p36 = scmp.ne.s32.totalorder %s25, %s28
      %p37 = scmp.eq.s32.totalorder %s20, 1
      %p38 = por %p36, %p37
      %p39 = scmp.ne.s32.totalorder %s28, %s29
      %p40 = scmp.eq.s32.totalorder %s20, 0
      %p41 = por %p39, %p40
      %p42 = scmp.ne.s32.totalorder %s28, %s29
      %p43 = scmp.eq.s32.totalorder %s21, 1
      %p44 = por %p42, %p43
      %p46 = scmp.ne.s32.totalorder %s29, %s45
      %p47 = scmp.eq.s32.totalorder %s21, 0
      %p48 = por %p46, %p47
      %s50 = sadd.s32 %s49, 1
      %p53 = scmp.eq.s32.totalorder %s15, 1
      %p54 = scmp.ne.s32.totalorder %s49, %s51
      %p55 = scmp.eq.s32.totalorder %s15, 0
      %p56 = por %p54, %p55
      %p57 = scmp.ne.s32.totalorder %s49, %s51
      %p58 = scmp.eq.s32.totalorder %s20, 1
      %p59 = por %p57, %p58
      %p60 = scmp.ne.s32.totalorder %s51, %s52
      %p61 = scmp.eq.s32.totalorder %s20, 0
      %p62 = por %p60, %p61
      %p63 = scmp.ne.s32.totalorder %s51, %s52
      %p64 = scmp.eq.s32.totalorder %s21, 1
      %p65 = por %p63, %p64
      %p67 = scmp.ne.s32.totalorder %s52, %s66
      %p68 = scmp.eq.s32.totalorder %s21, 0
      %p69 = por %p67, %p68
      %s71 = sadd.s32 %s70, 1
      %p74 = scmp.eq.s32.totalorder %s15, 1
      %p75 = scmp.ne.s32.totalorder %s70, %s72
      %p76 = scmp.eq.s32.totalorder %s15, 0
      %p77 = por %p75, %p76
      %p78 = scmp.ne.s32.totalorder %s70, %s72
      %p79 = scmp.eq.s32.totalorder %s20, 1
      %p80 = por %p78, %p79
      %p81 = scmp.ne.s32.totalorder %s72, %s73
      %p82 = scmp.eq.s32.totalorder %s20, 0
      %p83 = por %p81, %p82
      %p84 = scmp.ne.s32.totalorder %s72, %s73
      %p85 = scmp.eq.s32.totalorder %s21, 1
      %p86 = por %p84, %p85
      %p88 = scmp.ne.s32.totalorder %s73, %s87
      %p89 = scmp.eq.s32.totalorder %s21, 0
      %p90 = por %p88, %p89
      %s91 = ssub.s32 %s15, %s22
      %p92 = scmp.eq.s32.totalorder %s91, 0
      %s94 = sadd.s32 %s93, 1
      %s95 = scalar_select %p92, %s93, %s94
      %p98 = pneg %p92
      %p99 = scmp.eq.s32.totalorder %s15, 1
      %p100 = por %p98, %p99
      %p101 = scmp.ne.s32.totalorder %s93, %s96
      %p102 = scmp.eq.s32.totalorder %s15, 0
      %p103 = por %p101, %p102
      %p104 = scmp.ne.s32.totalorder %s93, %s96
      %p105 = scmp.eq.s32.totalorder %s20, 1
      %p106 = por %p104, %p105
      %p107 = scmp.ne.s32.totalorder %s96, %s97
      %p108 = scmp.eq.s32.totalorder %s20, 0
      %p109 = por %p107, %p108
      %p110 = scmp.ne.s32.totalorder %s96, %s97
      %p111 = scmp.eq.s32.totalorder %s21, 1
      %p112 = por %p110, %p111
      %p114 = scmp.ne.s32.totalorder %s97, %s113
      %p115 = scmp.eq.s32.totalorder %s21, 0
      %p116 = por %p114, %p115
      %p117 = scmp.le.s32.totalorder 1, %s15
      %p118 = scmp.lt.s32.totalorder %s15, 3
      %p119 = pnand %p117, %p118
      %p120 = pneg %p119
      // Predicated region
      $region9: #{residual_linear.1} parent=5 // pred_check
        _
      $region10: #{residual_linear.1} parent=5 // pred_check_branch
        %122 = sbr.rel (%p119) target = $region12
      $region11: #{residual_linear.1} parent=5 // pred_region
        %s123 = ssub.s32 %s15, 1
        // Predicated region
        $region13: #{residual_linear.1} parent=11 // pred_check
          %p124 = pneg %p62
        $region14: #{residual_linear.1} parent=11 // pred_check_branch
          %126 = sbr.rel (%p124) target = $region16
        $region15: #{residual_linear.1} parent=11 // pred_region
          _
        $region16: #{residual_linear.1} parent=11 // pred_fallthru
          _
        // Predicated region
        $region17: #{residual_linear.1} parent=11 // pred_check
          %p127 = pneg %p83
        $region18: #{residual_linear.1} parent=11 // pred_check_branch
          %129 = sbr.rel (%p127) target = $region20
        $region19: #{residual_linear.1} parent=11 // pred_region
          _
        $region20: #{residual_linear.1} parent=11 // pred_fallthru
          _
      $region12: #{residual_linear.1} parent=5 // pred_fallthru
        _
      %p130 = scmp.lt.s32.totalorder %s15, 2
      // Predicated region
      $region21: #{residual_linear.1} parent=5 // pred_check
        %p131 = pneg %p130
      $region22: #{residual_linear.1} parent=5 // pred_check_branch
        %133 = sbr.rel (%p131) target = $region24
      $region23: #{residual_linear.1} parent=5 // pred_region
        // Predicated region
        $region25: #{residual_linear.1} parent=23 // pred_check
          %p134 = pneg %p35
        $region26: #{residual_linear.1} parent=23 // pred_check_branch
          %136 = sbr.rel (%p134) target = $region28
        $region27: #{residual_linear.1} parent=23 // pred_region
          %s137 = sand.u32 %s25, 1
          %s138 = scalar_lea.sflag [#allocation3], %s137
          %s139 = sand.u32 %s25, 1
          %s140 = smul.addr %s139, 256
          %s141 = scalar_lea.vmem [#allocation2], %s140
          %s142 = smul.u32 32, %s15
          %s144 = ssub.s32 4096, 4096
          %145 = vsyncadd %s138, %s144
          %s146 = smul.addr %s142, 128
          %s147 = scalar_lea.hbm %s0, %s146
          %s148 = sshll.u32 %s141, 4
          %s149 = int_to_ptr.vmem [resolvable:$true] %s148
          %154 = dma.hbm_to_vmem [thread:$0]  %s147, 4096, %s149, %s138, 128, 128, 8
        $region28: #{residual_linear.1} parent=23 // pred_fallthru
          _
      $region24: #{residual_linear.1} parent=5 // pred_fallthru
        _
      %p155 = scmp.le.s32.totalorder 1, %s15
      %p156 = scmp.lt.s32.totalorder %s15, 3
      %p157 = pnand %p155, %p156
      %p158 = pneg %p157
      // Predicated region
      $region29: #{residual_linear.1} parent=5 // pred_check
        _
      $region30: #{residual_linear.1} parent=5 // pred_check_branch
        %160 = sbr.rel (%p157) target = $region32
      $region31: #{residual_linear.1} parent=5 // pred_region
        %s161 = ssub.s32 %s15, 1
        %s162 = sand.u32 %s28, 1
        %s163 = scalar_lea.sflag [#allocation3], %s162
        %s164 = sand.u32 %s28, 1
        %s165 = smul.addr %s164, 256
        %s166 = scalar_lea.vmem [#allocation2], %s165
        // Predicated region
        $region33: #{residual_linear.1} parent=31 // pred_check
          %p167 = pneg %p41
        $region34: #{residual_linear.1} parent=31 // pred_check_branch
          %169 = sbr.rel (%p167) target = $region36
        $region35: #{residual_linear.1} parent=31 // pred_region
          %170 = dma.done %s163, 4096
        $region36: #{residual_linear.1} parent=31 // pred_fallthru
          _
        %s171 = sand.u32 %s28, 1
        %s172 = scalar_lea.sflag [#allocation3], %s171
        %s173 = sand.u32 %s28, 1
        %s174 = smul.addr %s173, 256
        %s175 = scalar_lea.vmem [#allocation2], %s174
        %p176 = pneg %p41
        %p177 = pneg %p38
        %p178 = pneg %p62
        %p179 = pneg %p59
        %p180 = pneg %p83
        %p181 = pneg %p80
        %p182 = pneg %p109
        %p183 = pneg %p106
        %s184 = sand.u32 %s96, 1
        %s185 = scalar_lea.sflag [#allocation4], %s184
        %s186 = sand.u32 %s96, 1
        %s187 = smul.addr %s186, 256
        %s188 = scalar_lea.vmem [#allocation5], %s187
        %s189 = smul.u32 32, %s20
        %s190 = smul.u32 32, %s20
        %v192 = vld [vmem:[%s166] sm:$0xff]
        %v193 = vld [vmem:[%s166 + $0x8] sm:$0xff]
        %v194 = vld [vmem:[%s166 + $0x10] sm:$0xff]
        %v195 = vld [vmem:[%s166 + $0x18] sm:$0xff]
        %v196 = vld [vmem:[%s166 + $0x20] sm:$0xff]
        %v197 = vld [vmem:[%s166 + $0x28] sm:$0xff]
        %v198 = vld [vmem:[%s166 + $0x30] sm:$0xff]
        %v199 = vld [vmem:[%s166 + $0x38] sm:$0xff]
        %v200 = vld [vmem:[%s166 + $0x40] sm:$0xff]
        %v201 = vld [vmem:[%s166 + $0x48] sm:$0xff]
        %v202 = vld [vmem:[%s166 + $0x50] sm:$0xff]
        %v203 = vld [vmem:[%s166 + $0x58] sm:$0xff]
        %v204 = vld [vmem:[%s166 + $0x60] sm:$0xff]
        %v205 = vld [vmem:[%s166 + $0x68] sm:$0xff]
        %v206 = vld [vmem:[%s166 + $0x70] sm:$0xff]
        %v207 = vld [vmem:[%s166 + $0x78] sm:$0xff]
        %v208 = vld [vmem:[%s166 + $0x80] sm:$0xff]
        %v209 = vld [vmem:[%s166 + $0x88] sm:$0xff]
        %v210 = vld [vmem:[%s166 + $0x90] sm:$0xff]
        %v211 = vld [vmem:[%s166 + $0x98] sm:$0xff]
        %v212 = vld [vmem:[%s166 + $0xa0] sm:$0xff]
        %v213 = vld [vmem:[%s166 + $0xa8] sm:$0xff]
        %v214 = vld [vmem:[%s166 + $0xb0] sm:$0xff]
        %v215 = vld [vmem:[%s166 + $0xb8] sm:$0xff]
        %v216 = vld [vmem:[%s166 + $0xc0] sm:$0xff]
        %v217 = vld [vmem:[%s166 + $0xc8] sm:$0xff]
        %v218 = vld [vmem:[%s166 + $0xd0] sm:$0xff]
        %v219 = vld [vmem:[%s166 + $0xd8] sm:$0xff]
        %v220 = vld [vmem:[%s166 + $0xe0] sm:$0xff]
        %v221 = vld [vmem:[%s166 + $0xe8] sm:$0xff]
        %v222 = vld [vmem:[%s166 + $0xf0] sm:$0xff]
        %v223 = vld [vmem:[%s166 + $0xf8] sm:$0xff]
        %v224 = vpack.c.bf16 %v193, %v192
        %v225 = vpack.c.bf16 %v195, %v194
        %v226 = vpack.c.bf16 %v197, %v196
        %v227 = vpack.c.bf16 %v199, %v198
        %v228 = vpack.c.bf16 %v201, %v200
        %v229 = vpack.c.bf16 %v203, %v202
        %v230 = vpack.c.bf16 %v205, %v204
        %v231 = vpack.c.bf16 %v207, %v206
        %v232 = vpack.c.bf16 %v209, %v208
        %v233 = vpack.c.bf16 %v211, %v210
        %v234 = vpack.c.bf16 %v213, %v212
        %v235 = vpack.c.bf16 %v215, %v214
        %v236 = vpack.c.bf16 %v217, %v216
        %v237 = vpack.c.bf16 %v219, %v218
        %v238 = vpack.c.bf16 %v221, %v220
        %v239 = vpack.c.bf16 %v223, %v222
        %v240 = vld [vmem:[%s1] sm:$0xf]
        %v241 = vld [vmem:[%s1 + $0x4] sm:$0xf]
        %v242 = vld [vmem:[%s1 + $0x8] sm:$0xf]
        %v243 = vld [vmem:[%s1 + $0xc] sm:$0xf]
        %v244 = vld [vmem:[%s1 + $0x10] sm:$0xf]
        %v245 = vld [vmem:[%s1 + $0x14] sm:$0xf]
        %v246 = vld [vmem:[%s1 + $0x18] sm:$0xf]
        %v247 = vld [vmem:[%s1 + $0x1c] sm:$0xf]
        %v248 = vld [vmem:[%s1 + $0x20] sm:$0xf]
        %v249 = vld [vmem:[%s1 + $0x24] sm:$0xf]
        %v250 = vld [vmem:[%s1 + $0x28] sm:$0xf]
        %v251 = vld [vmem:[%s1 + $0x2c] sm:$0xf]
        %v252 = vld [vmem:[%s1 + $0x30] sm:$0xf]
        %v253 = vld [vmem:[%s1 + $0x34] sm:$0xf]
        %v254 = vld [vmem:[%s1 + $0x38] sm:$0xf]
        %v255 = vld [vmem:[%s1 + $0x3c] sm:$0xf]
        %v256 = vld [vmem:[%s2] sm:$0x1]
        %v258 = vlaneseq
        %v259 = vshrl.u32 %v258, 7
        %v260 = vsub.s32 0, %v259
        %v261 = vrot.slane %v256, %v260
        %v279 = vunpack.c.l.b16 %v240
        %v280 = vunpack.c.l.b16 %v241
        %v281 = vunpack.c.l.b16 %v242
        %v282 = vunpack.c.l.b16 %v243
        %v283 = vunpack.c.l.b16 %v244
        %v284 = vunpack.c.l.b16 %v245
        %v285 = vunpack.c.l.b16 %v246
        %v286 = vunpack.c.l.b16 %v247
        %v287 = vunpack.c.l.b16 %v248
        %v288 = vunpack.c.l.b16 %v249
        %v289 = vunpack.c.l.b16 %v250
        %v290 = vunpack.c.l.b16 %v251
        %v291 = vunpack.c.l.b16 %v252
        %v292 = vunpack.c.l.b16 %v253
        %v293 = vunpack.c.l.b16 %v254
        %v294 = vunpack.c.l.b16 %v255
        %v295 = vpack.c.b16 %v280, %v279
        %v296 = vpack.c.b16 %v282, %v281
        %v297 = vpack.c.b16 %v284, %v283
        %v298 = vpack.c.b16 %v286, %v285
        %v299 = vpack.c.b16 %v288, %v287
        %v300 = vpack.c.b16 %v290, %v289
        %v301 = vpack.c.b16 %v292, %v291
        %v302 = vpack.c.b16 %v294, %v293
        %311 = vmatprep.subr.bf16.mxu0 0
        %312 = vmatpush1.bf16.msra.mxu0 %v302
        %313 = vmatprep.subr.bf16.mxu0 0
        %314 = vmatpush1.bf16.msra.mxu0 %v301
        %315 = vmatprep.subr.bf16.mxu0 0
        %316 = vmatpush1.bf16.msra.mxu0 %v300
        %317 = vmatprep.subr.bf16.mxu0 0
        %318 = vmatpush1.bf16.msra.mxu0 %v299
        %319 = vmatprep.subr.bf16.mxu0 0
        %320 = vmatpush1.bf16.msra.mxu0 %v298
        %321 = vmatprep.subr.bf16.mxu0 0
        %322 = vmatpush1.bf16.msra.mxu0 %v297
        %323 = vmatprep.subr.bf16.mxu0 0
        %324 = vmatpush1.bf16.msra.mxu0 %v296
        %325 = vmatprep.subr.bf16.mxu0 0
        %326 = vmatpush1.bf16.msra.mxu0 %v295
        %327 = vmatprep.subr.bf16.mxu0 0
        %328 = vmatpush2.bf16.msra.mxu0 0
        %329 = vmatprep.subr.bf16.mxu0 0
        %330 = vmatpush2.bf16.msra.mxu0 0
        %331 = vmatprep.subr.bf16.mxu0 0
        %332 = vmatpush2.bf16.msra.mxu0 0
        %333 = vmatprep.subr.bf16.mxu0 0
        %334 = vmatpush2.bf16.msra.mxu0 0
        %335 = vmatprep.subr.bf16.mxu0 0
        %336 = vmatpush2.bf16.msra.mxu0 0
        %337 = vmatprep.subr.bf16.mxu0 0
        %338 = vmatpush2.bf16.msra.mxu0 0
        %339 = vmatprep.subr.bf16.mxu0 0
        %340 = vmatpush2.bf16.msra.mxu0 0
        %341 = vmatprep.subr.bf16.mxu0 0
        %342 = vmatpush2.bf16.msra.mxu0 0
        %343 = vmatprep.mubr.bf16.mxu0 0
        %344 = vmatmul.mubr.bf16.gmra.mxu0 %v224
        %v345 = vpop.f32.mrf.mxu0
        %v346 = vadd.f32 %v261, %v345
        %v347 = vpop.f32.mrf.mxu0
        %v348 = vpop.f32.mrf.mxu0
        %v349 = vadd.f32 %v261, %v348
        %v350 = vpop.f32.mrf.mxu0
        %351 = vmatprep.mubr.bf16.mxu0 0
        %352 = vmatmul.mubr.bf16.gmra.mxu0 %v225
        %v353 = vpop.f32.mrf.mxu0
        %v354 = vadd.f32 %v261, %v353
        %v355 = vpop.f32.mrf.mxu0
        %v356 = vpop.f32.mrf.mxu0
        %v357 = vadd.f32 %v261, %v356
        %v358 = vpop.f32.mrf.mxu0
        %359 = vmatprep.mubr.bf16.mxu0 0
        %360 = vmatmul.mubr.bf16.gmra.mxu0 %v226
        %v361 = vpop.f32.mrf.mxu0
        %v362 = vadd.f32 %v261, %v361
        %v363 = vpop.f32.mrf.mxu0
        %v364 = vpop.f32.mrf.mxu0
        %v365 = vadd.f32 %v261, %v364
        %v366 = vpop.f32.mrf.mxu0
        %367 = vmatprep.mubr.bf16.mxu0 0
        %368 = vmatmul.mubr.bf16.gmra.mxu0 %v227
        %v369 = vpop.f32.mrf.mxu0
        %v370 = vadd.f32 %v261, %v369
        %v371 = vpop.f32.mrf.mxu0
        %v372 = vpop.f32.mrf.mxu0
        %v373 = vadd.f32 %v261, %v372
        %v374 = vpop.f32.mrf.mxu0
        %375 = vmatprep.mubr.bf16.mxu0 0
        %376 = vmatmul.mubr.bf16.gmra.mxu0 %v228
        %v377 = vpop.f32.mrf.mxu0
        %v378 = vadd.f32 %v261, %v377
        %v379 = vpop.f32.mrf.mxu0
        %v380 = vpop.f32.mrf.mxu0
        %v381 = vadd.f32 %v261, %v380
        %v382 = vpop.f32.mrf.mxu0
        %383 = vmatprep.mubr.bf16.mxu0 0
        %384 = vmatmul.mubr.bf16.gmra.mxu0 %v229
        %v385 = vpop.f32.mrf.mxu0
        %v386 = vadd.f32 %v261, %v385
        %v387 = vpop.f32.mrf.mxu0
        %v388 = vpop.f32.mrf.mxu0
        %v389 = vadd.f32 %v261, %v388
        %v390 = vpop.f32.mrf.mxu0
        %391 = vmatprep.mubr.bf16.mxu0 0
        %392 = vmatmul.mubr.bf16.gmra.mxu0 %v230
        %v393 = vpop.f32.mrf.mxu0
        %v394 = vadd.f32 %v261, %v393
        %v395 = vpop.f32.mrf.mxu0
        %v396 = vpop.f32.mrf.mxu0
        %v397 = vadd.f32 %v261, %v396
        %v398 = vpop.f32.mrf.mxu0
        %399 = vmatprep.mubr.bf16.mxu0 0
        %400 = vmatmul.mubr.bf16.gmra.mxu0 %v231
        %v401 = vpop.f32.mrf.mxu0
        %v402 = vadd.f32 %v261, %v401
        %v403 = vpop.f32.mrf.mxu0
        %v404 = vpop.f32.mrf.mxu0
        %v405 = vadd.f32 %v261, %v404
        %v406 = vpop.f32.mrf.mxu0
        %407 = vmatprep.mubr.bf16.mxu0 0
        %408 = vmatmul.mubr.bf16.gmra.mxu0 %v232
        %v409 = vpop.f32.mrf.mxu0
        %v410 = vadd.f32 %v261, %v409
        %v411 = vpop.f32.mrf.mxu0
        %v412 = vpop.f32.mrf.mxu0
        %v413 = vadd.f32 %v261, %v412
        %v414 = vpop.f32.mrf.mxu0
        %415 = vmatprep.mubr.bf16.mxu0 0
        %416 = vmatmul.mubr.bf16.gmra.mxu0 %v233
        %v417 = vpop.f32.mrf.mxu0
        %v418 = vadd.f32 %v261, %v417
        %v419 = vpop.f32.mrf.mxu0
        %v420 = vpop.f32.mrf.mxu0
        %v421 = vadd.f32 %v261, %v420
        %v422 = vpop.f32.mrf.mxu0
        %423 = vmatprep.mubr.bf16.mxu0 0
        %424 = vmatmul.mubr.bf16.gmra.mxu0 %v234
        %v425 = vpop.f32.mrf.mxu0
        %v426 = vadd.f32 %v261, %v425
        %v427 = vpop.f32.mrf.mxu0
        %v428 = vpop.f32.mrf.mxu0
        %v429 = vadd.f32 %v261, %v428
        %v430 = vpop.f32.mrf.mxu0
        %431 = vmatprep.mubr.bf16.mxu0 0
        %432 = vmatmul.mubr.bf16.gmra.mxu0 %v235
        %v433 = vpop.f32.mrf.mxu0
        %v434 = vadd.f32 %v261, %v433
        %v435 = vpop.f32.mrf.mxu0
        %v436 = vpop.f32.mrf.mxu0
        %v437 = vadd.f32 %v261, %v436
        %v438 = vpop.f32.mrf.mxu0
        %439 = vmatprep.mubr.bf16.mxu0 0
        %440 = vmatmul.mubr.bf16.gmra.mxu0 %v236
        %v441 = vpop.f32.mrf.mxu0
        %v442 = vadd.f32 %v261, %v441
        %v443 = vpop.f32.mrf.mxu0
        %v444 = vpop.f32.mrf.mxu0
        %v445 = vadd.f32 %v261, %v444
        %v446 = vpop.f32.mrf.mxu0
        %447 = vmatprep.mubr.bf16.mxu0 0
        %448 = vmatmul.mubr.bf16.gmra.mxu0 %v237
        %v449 = vpop.f32.mrf.mxu0
        %v450 = vadd.f32 %v261, %v449
        %v451 = vpop.f32.mrf.mxu0
        %v452 = vpop.f32.mrf.mxu0
        %v453 = vadd.f32 %v261, %v452
        %v454 = vpop.f32.mrf.mxu0
        %455 = vmatprep.mubr.bf16.mxu0 0
        %456 = vmatmul.mubr.bf16.gmra.mxu0 %v238
        %v457 = vpop.f32.mrf.mxu0
        %v458 = vadd.f32 %v261, %v457
        %v459 = vpop.f32.mrf.mxu0
        %v460 = vpop.f32.mrf.mxu0
        %v461 = vadd.f32 %v261, %v460
        %v462 = vpop.f32.mrf.mxu0
        %463 = vmatprep.mubr.bf16.mxu0 0
        %464 = vmatmul.mubr.bf16.gmra.mxu0 %v239
        %v465 = vpop.f32.mrf.mxu0
        %v466 = vadd.f32 %v261, %v465
        %v467 = vpop.f32.mrf.mxu0
        %v468 = vpop.f32.mrf.mxu0
        %v469 = vadd.f32 %v261, %v468
        %v470 = vpop.f32.mrf.mxu0
        %471 = vdwg.mxu0
        %v472 = vadd.f32 %v346, %v192
        %v473 = vadd.f32 %v349, %v193
        %v474 = vadd.f32 %v354, %v194
        %v475 = vadd.f32 %v357, %v195
        %v476 = vadd.f32 %v362, %v196
        %v477 = vadd.f32 %v365, %v197
        %v478 = vadd.f32 %v370, %v198
        %v479 = vadd.f32 %v373, %v199
        %v480 = vadd.f32 %v378, %v200
        %v481 = vadd.f32 %v381, %v201
        %v482 = vadd.f32 %v386, %v202
        %v483 = vadd.f32 %v389, %v203
        %v484 = vadd.f32 %v394, %v204
        %v485 = vadd.f32 %v397, %v205
        %v486 = vadd.f32 %v402, %v206
        %v487 = vadd.f32 %v405, %v207
        %v488 = vadd.f32 %v410, %v208
        %v489 = vadd.f32 %v413, %v209
        %v490 = vadd.f32 %v418, %v210
        %v491 = vadd.f32 %v421, %v211
        %v492 = vadd.f32 %v426, %v212
        %v493 = vadd.f32 %v429, %v213
        %v494 = vadd.f32 %v434, %v214
        %v495 = vadd.f32 %v437, %v215
        %v496 = vadd.f32 %v442, %v216
        %v497 = vadd.f32 %v445, %v217
        %v498 = vadd.f32 %v450, %v218
        %v499 = vadd.f32 %v453, %v219
        %v500 = vadd.f32 %v458, %v220
        %v501 = vadd.f32 %v461, %v221
        %v502 = vadd.f32 %v466, %v222
        %v503 = vadd.f32 %v469, %v223
        %504 = vst [vmem:[%s188] sm:$0xff] %v472
        %505 = vst [vmem:[%s188 + $0x8] sm:$0xff] %v473
        %506 = vst [vmem:[%s188 + $0x10] sm:$0xff] %v474
        %507 = vst [vmem:[%s188 + $0x18] sm:$0xff] %v475
        %508 = vst [vmem:[%s188 + $0x20] sm:$0xff] %v476
        %509 = vst [vmem:[%s188 + $0x28] sm:$0xff] %v477
        %510 = vst [vmem:[%s188 + $0x30] sm:$0xff] %v478
        %511 = vst [vmem:[%s188 + $0x38] sm:$0xff] %v479
        %512 = vst [vmem:[%s188 + $0x40] sm:$0xff] %v480
        %513 = vst [vmem:[%s188 + $0x48] sm:$0xff] %v481
        %514 = vst [vmem:[%s188 + $0x50] sm:$0xff] %v482
        %515 = vst [vmem:[%s188 + $0x58] sm:$0xff] %v483
        %516 = vst [vmem:[%s188 + $0x60] sm:$0xff] %v484
        %517 = vst [vmem:[%s188 + $0x68] sm:$0xff] %v485
        %518 = vst [vmem:[%s188 + $0x70] sm:$0xff] %v486
        %519 = vst [vmem:[%s188 + $0x78] sm:$0xff] %v487
        %520 = vst [vmem:[%s188 + $0x80] sm:$0xff] %v488
        %521 = vst [vmem:[%s188 + $0x88] sm:$0xff] %v489
        %522 = vst [vmem:[%s188 + $0x90] sm:$0xff] %v490
        %523 = vst [vmem:[%s188 + $0x98] sm:$0xff] %v491
        %524 = vst [vmem:[%s188 + $0xa0] sm:$0xff] %v492
        %525 = vst [vmem:[%s188 + $0xa8] sm:$0xff] %v493
        %526 = vst [vmem:[%s188 + $0xb0] sm:$0xff] %v494
        %527 = vst [vmem:[%s188 + $0xb8] sm:$0xff] %v495
        %528 = vst [vmem:[%s188 + $0xc0] sm:$0xff] %v496
        %529 = vst [vmem:[%s188 + $0xc8] sm:$0xff] %v497
        %530 = vst [vmem:[%s188 + $0xd0] sm:$0xff] %v498
        %531 = vst [vmem:[%s188 + $0xd8] sm:$0xff] %v499
        %532 = vst [vmem:[%s188 + $0xe0] sm:$0xff] %v500
        %533 = vst [vmem:[%s188 + $0xe8] sm:$0xff] %v501
        %534 = vst [vmem:[%s188 + $0xf0] sm:$0xff] %v502
        %535 = vst [vmem:[%s188 + $0xf8] sm:$0xff] %v503
        %s536 = sand.u32 %s96, 1
        %s537 = scalar_lea.sflag [#allocation4], %s536
        %s538 = sand.u32 %s96, 1
        %s539 = smul.addr %s538, 256
        %s540 = scalar_lea.vmem [#allocation5], %s539
        // Predicated region
        $region37: #{residual_linear.1} parent=31 // pred_check
          %p541 = pneg %p106
        $region38: #{residual_linear.1} parent=31 // pred_check_branch
          %543 = sbr.rel (%p541) target = $region40
        $region39: #{residual_linear.1} parent=31 // pred_region
          %s544 = smul.u32 32, %s20
          %s546 = ssub.s32 4096, 4096
          %547 = vsyncadd %s537, %s546
          %s548 = smul.addr %s544, 128
          %s549 = scalar_lea.hbm %s3, %s548
          %s550 = sshll.u32 %s540, 4
          %s551 = int_to_ptr.vmem [resolvable:$true] %s550
          %556 = dma.vmem_to_hbm [thread:$0]  %s551, 4096, %s549, %s537, 128, 128, 8
        $region40: #{residual_linear.1} parent=31 // pred_fallthru
          _
      $region32: #{residual_linear.1} parent=5 // pred_fallthru
        _
      %p557 = scmp.le.s32.totalorder 2, %s15
      // Predicated region
      $region41: #{residual_linear.1} parent=5 // pred_check
        %p558 = pneg %p557
      $region42: #{residual_linear.1} parent=5 // pred_check_branch
        %560 = sbr.rel (%p558) target = $region44
      $region43: #{residual_linear.1} parent=5 // pred_region
        %s561 = ssub.s32 %s15, 2
        // Predicated region
        $region45: #{residual_linear.1} parent=43 // pred_check
          %p562 = pneg %p112
        $region46: #{residual_linear.1} parent=43 // pred_check_branch
          %564 = sbr.rel (%p562) target = $region48
        $region47: #{residual_linear.1} parent=43 // pred_region
          %s565 = sand.u32 %s97, 1
          %s566 = scalar_lea.sflag [#allocation4], %s565
          %s567 = sand.u32 %s97, 1
          %s568 = smul.addr %s567, 256
          %s569 = scalar_lea.vmem [#allocation5], %s568
          %570 = dma.done %s566, 4096
        $region48: #{residual_linear.1} parent=43 // pred_fallthru
          _
      $region44: #{residual_linear.1} parent=5 // pred_fallthru
        _
    $region6: #{residual_linear.1} parent=1 // loop_footer
      %s19 = sadd.s32 1, %s15
    $region7: #{residual_linear.1} parent=1 // loop_footer_branch
      %14 = sbr.rel target = $region3
    $region8: #{residual_linear.1} parent=1 // loop_exit
      _
    %571 = vsyncpa [#allocation3], 1
    %s572 = scalar_lea.sflag [#allocation3], 1
    %573 = vsyncpa %s572, 1
    %574 = vsyncpa [#allocation4], 1
    %s575 = scalar_lea.sflag [#allocation4], 1
    %576 = vsyncpa %s575, 1

</llo_original>
